<compile_context>
chip_gen: v7x
topology: tpu7x:2x2x1
jax: 0.10.0
libtpu: 0.0.40
codegen_flags: <defaults>
</compile_context>

<pallas_src>
import functools
import math

import jax
import jax.numpy as jnp
import numpy as np
from jax.experimental import pallas as pl
from jax.experimental.pallas import tpu as pltpu


def _round_up(x, m):
    return ((x + m - 1) // m) * m


def _vmem_budget_bytes():
    """Scoped-VMEM budget: ~78% of physical (~100 MiB on v5e/v6e, ~50 MiB on v7x)."""
    try:
        cap = pltpu.get_tpu_info().vmem_capacity_bytes
        return min(int(cap * 0.78), 100 << 20)
    except Exception:
        return 48 << 20  # conservative default that fits every generation


def _pick_tc(T, B, wp, x_bytes, y_bytes, w_bytes, budget):
    """Time-chunk length: VMEM-budget aware, unroll capped at ~64 steps."""
    base = 8 // math.gcd(B, 8)                            # rows/chunk must be a multiple of 8
    tc = min(_round_up(T, base), _round_up(64, base))     # cap the static unroll

    def vmem_need(tc_):
        rows = tc_ * B
        blk = rows * wp
        return (w_bytes                  # resident gate weights / biases / asc / h0 / hn
                + 2 * blk * x_bytes      # double-buffered x stream
                + 2 * blk * y_bytes      # double-buffered y stream
                + 2 * rows * 128 * 4     # seg stream (lane-padded int32)
                + 6 * blk * 4)           # in-kernel f32 temporaries

    while tc > base and vmem_need(tc) > budget:
        tc -= base
    return max(tc, base)


def _rglru_kernel(flags_ref, x_ref, seg_ref, h0_ref, wi_ref, wa_ref,
                  bi_ref, ba_ref, asc_ref, y_ref, hn_ref,
                  *, tc, batch, t_real, t_pad):
    """One time-chunk of the RG-LRU forward.

    flags_ref: (n_chunks,) SMEM   per-chunk "any segment_pos != 0" flag (scalar prefetch)
    x_ref    : (tc*B, wp)         input rows for this chunk (row = t*B + b), lane-padded
    seg_ref  : (tc*B, 1)          segment positions (reset where == 0)
    h0_ref   : (B, wp)            initial hidden state (resident)
    wi_ref   : (wp, wp)           input-gate weights (resident, bf16 or f32)
    wa_ref   : (wp, wp)           recurrence-gate weights (resident, bf16 or f32)
    bi_ref   : (1, wp) f32        input-gate bias
    ba_ref   : (1, wp) f32        recurrence-gate bias
    asc_ref  : (1, wp) f32        precomputed -8 * softplus(a_param)
    y_ref    : (tc*B, wp)         output rows for this chunk
    hn_ref   : (B, wp) f32        final hidden state; doubles as the cross-chunk carry
    """
    chunk = pl.program_id(0)
    n_chunks = pl.num_programs(0)
    pad_steps = t_pad - t_real

    # First chunk: seed the resident carry (hn_ref has a constant index map -> stays in VMEM).
    @pl.when(chunk == 0)
    def _():
        hn_ref[...] = h0_ref[...]

    # Work common to both paths: the input gate (MXU, f32 accumulation).
    x = x_ref[...]
    gate_x = jax.nn.sigmoid(
        jnp.dot(x, wi_ref[...], preferred_element_type=jnp.float32) + bi_ref[...])
    xg = x.astype(jnp.float32) * gate_x          # == nx whenever every row resets (mult = 1)

    # Sublane-aligned slab grouping for the scan's y stores.
    if batch % 8 == 0:
        g = 1                                    # each step's rows are already 8-aligned
    elif 8 % batch == 0:
        g = 8 // batch                           # pack g consecutive steps into 8 sublanes
    else:
        g = 1                                    # fallback: masked stores (correct, slower)
    slab = g * batch
    n_slabs = tc // g                            # tc is a multiple of g by construction

    has_nonreset = flags_ref[chunk] != 0

    # ---- Fast path: every row of this chunk has segment_pos == 0  =>  a = 0, mult = 1.
    #      y = x * gate_x, no serial dependence, one dense store; W_a matmul / exp / sqrt skipped.
    @pl.when(jnp.logical_not(has_nonreset))
    def _():
        y_ref[...] = xg.astype(y_ref.dtype)
        if pad_steps == 0:
            h_last = xg[(tc - 1) * batch:, :]
        else:
            full = xg[(tc - 1) * batch: tc * batch, :]
            valid = xg[(tc - 1 - pad_steps) * batch: (tc - pad_steps) * batch, :]
            h_last = jnp.where(chunk == n_chunks - 1, valid, full)
        hn_ref[...] = h_last

    # ---- General path: per-row resets, recurrence gate, sequential scan.
    @pl.when(has_nonreset)
    def _():
        gate_a = jax.nn.sigmoid(
            jnp.dot(x, wa_ref[...], preferred_element_type=jnp.float32) + ba_ref[...])
        log_a = gate_a * asc_ref[...]            # -8 * gate_a * softplus(A)
        a = jnp.exp(log_a)
        a_sq = a * a                             # == exp(2*log_a), no second exp
        reset = seg_ref[...] == 0                # (rows, 1) -> lane broadcast
        mult = jnp.where(reset, 1.0, jnp.sqrt(1.0 - a_sq))
        nx = xg * mult
        a = jnp.where(reset, 0.0, a)

        h = hn_ref[...]
        base_t = chunk * tc
        for s in range(n_slabs):                 # static -> fully unrolled (tc capped <= 64)
            r0 = s * slab
            a_slab = a[r0:r0 + slab, :]          # aligned in-register slices
            nx_slab = nx[r0:r0 + slab, :]
            hs = []
            for j in range(g):
                t = s * g + j
                h_new = (a_slab[j * batch:(j + 1) * batch, :] * h
                         + nx_slab[j * batch:(j + 1) * batch, :])
                hs.append(h_new)
                # Padding mask only for the few static steps that can be padded
                # (they only matter in the last chunk; for earlier chunks the
                #  condition is trivially true).
                if pad_steps > 0 and t >= tc - pad_steps:
                    h = jnp.where(base_t + t < t_real, h_new, h)
                else:
                    h = h_new
            y_slab = hs[0] if g == 1 else jnp.concatenate(hs, axis=0)
            y_ref[r0:r0 + slab, :] = y_slab.astype(y_ref.dtype)   # one aligned 8-row store
        hn_ref[...] = h


@functools.partial(jax.jit, static_argnames=("tc", "precision"))
def rglru_forward(x_tbw, segment_pos, h0, w_i, b_i, w_a, b_a, a_param,
                  *, tc=None, precision="bfloat16"):
    """RG-LRU forward.  x_tbw: (T, B, W); segment_pos: (T, B) int; h0: (B, W)."""
    T, B, W = x_tbw.shape
    wp = _round_up(W, 128)                        # lane-dense width
    f32 = jnp.float32
    cdt = jnp.bfloat16 if precision == "bfloat16" else jnp.float32
    cbytes = jnp.dtype(cdt).itemsize
    ybytes = jnp.dtype(x_tbw.dtype).itemsize

    budget = _vmem_budget_bytes()
    w_bytes = 2 * wp * wp * cbytes + 3 * wp * 4 + 2 * B * wp * 4
    base = 8 // math.gcd(B, 8)
    if tc is None:
        tc = _pick_tc(T, B, wp, cbytes, ybytes, w_bytes, budget)
    tc = base * (-(-int(tc) // base))
    tc = max(base, min(tc, _round_up(T, base)))
    t_pad = _round_up(T, tc)
    n_chunks = t_pad // tc
    rows = tc * B

    # Lane-dense 2D staging (row = t*B + b); all padding done by XLA outside the kernel.
    x2 = x_tbw.astype(cdt).reshape(T * B, W)
    x2 = jnp.pad(x2, ((0, (t_pad - T) * B), (0, wp - W)))
    seg2 = jnp.pad(segment_pos.astype(jnp.int32).reshape(T * B, 1),
                   ((0, (t_pad - T) * B), (0, 0)))
    flags = (seg2.reshape(n_chunks, rows) != 0).any(axis=1).astype(jnp.int32)
    h0p = jnp.pad(h0.astype(f32), ((0, 0), (0, wp - W)))
    wi_p = jnp.pad(w_i.astype(cdt), ((0, wp - W), (0, wp - W)))
    wa_p = jnp.pad(w_a.astype(cdt), ((0, wp - W), (0, wp - W)))
    bi_p = jnp.pad(b_i.astype(f32), ((0, 0), (0, wp - W)))
    ba_p = jnp.pad(b_a.astype(f32), ((0, 0), (0, wp - W)))
    asc = -8.0 * jax.nn.softplus(jnp.pad(a_param.astype(f32), ((0, 0), (0, wp - W))))

    kernel = functools.partial(_rglru_kernel, tc=tc, batch=B, t_real=T, t_pad=t_pad)

    y2, hn_p = pl.pallas_call(
        kernel,
        out_shape=(
            jax.ShapeDtypeStruct((t_pad * B, wp), x_tbw.dtype),   # output rows
            jax.ShapeDtypeStruct((B, wp), f32),                   # final hidden state
        ),
        grid_spec=pltpu.PrefetchScalarGridSpec(
            num_scalar_prefetch=1,                                # per-chunk reset flags (SMEM)
            grid=(n_chunks,),
            in_specs=[
                pl.BlockSpec((rows, wp), lambda i, f: (i, 0)),    # x     (streamed)
                pl.BlockSpec((rows, 1), lambda i, f: (i, 0)),     # seg   (streamed)
                pl.BlockSpec((B, wp), lambda i, f: (0, 0)),       # h0    (resident)
                pl.BlockSpec((wp, wp), lambda i, f: (0, 0)),      # W_i   (resident)
                pl.BlockSpec((wp, wp), lambda i, f: (0, 0)),      # W_a   (resident)
                pl.BlockSpec((1, wp), lambda i, f: (0, 0)),       # b_i   (resident)
                pl.BlockSpec((1, wp), lambda i, f: (0, 0)),       # b_a   (resident)
                pl.BlockSpec((1, wp), lambda i, f: (0, 0)),       # -8*softplus(A)
            ],
            out_specs=[
                pl.BlockSpec((rows, wp), lambda i, f: (i, 0)),    # y     (streamed)
                pl.BlockSpec((B, wp), lambda i, f: (0, 0)),       # hn    (resident carry)
            ],
        ),
        compiler_params=pltpu.CompilerParams(
            dimension_semantics=("arbitrary",),                   # time is sequential
            vmem_limit_bytes=int(budget)),
    )(flags, x2, seg2, h0p, wi_p, wa_p, bi_p, ba_p, asc)

    y = y2[: T * B, :W].reshape(T, B, W)
    hn = hn_p[:, :W]
    return y, hn


def rglru_wrapper_forward(params, inp, hx=None, batch_first=False, tc=None,
                          precision="bfloat16"):
    """Mirrors RGLRUWrapper.forward. inp: (T, B, W) if not batch_first else (B, T, W)."""
    if batch_first:
        inp = jnp.transpose(inp, (1, 0, 2))                       # -> (T, B, W)
    T, B, W = inp.shape
    if hx is None:
        hx = jnp.zeros((B, W), dtype=inp.dtype)
    segment_pos = jnp.zeros((T, B), dtype=jnp.int32)              # torch wrapper uses zeros
    y, hn = rglru_forward(inp, segment_pos, hx,
                          params["w_i"], params["b_i"],
                          params["w_a"], params["b_a"], params["a_param"],
                          tc=tc, precision=precision)
    y = y.astype(inp.dtype)
    hn = hn.astype(inp.dtype)
    if batch_first:
        y = jnp.transpose(y, (1, 0, 2))
    return y, hn


def rglru_reference(params, x_tbw, segment_pos, h0):
    """Pure-JAX reference for correctness checking."""
    hi = jax.lax.Precision.HIGHEST
    gate_x = jax.nn.sigmoid(
        jnp.einsum("tbi,ij->tbj", x_tbw, params["w_i"], precision=hi) + params["b_i"])
    gate_a = jax.nn.sigmoid(
        jnp.einsum("tbi,ij->tbj", x_tbw, params["w_a"], precision=hi) + params["b_a"])
    log_a = -8.0 * gate_a * jax.nn.softplus(params["a_param"])
    a = jnp.exp(log_a)
    a_sq = jnp.exp(2.0 * log_a)
    reset = (segment_pos == 0)[..., None]
    mult = jnp.where(reset, 1.0, jnp.sqrt(1.0 - a_sq))
    nx = x_tbw * gate_x * mult
    a = jnp.where(reset, 0.0, a)

    def step(h, inp):
        a_t, x_t = inp
        h = a_t * h + x_t
        return h, h

    h_last, ys = jax.lax.scan(step, h0, (a, nx))
    return ys, h_last


if __name__ == "__main__":
    # Small shapes consistent with the module: seq=8, batch=2, input_size=hidden_size=32.
    T, B, W = 8, 2, 32

    key = jax.random.PRNGKey(0)
    k_x, k_wi, k_bi, k_wa, k_ba, k_ap, k_x2, k_h0 = jax.random.split(key, 8)

    params = {
        "w_i": jax.random.normal(k_wi, (W, W), jnp.float32) / jnp.sqrt(W),
        "b_i": jax.random.normal(k_bi, (1, W), jnp.float32) * 0.1,
        "w_a": jax.random.normal(k_wa, (W, W), jnp.float32) / jnp.sqrt(W),
        "b_a": jax.random.normal(k_ba, (1, W), jnp.float32) * 0.1,
        "a_param": jax.random.uniform(k_ap, (1, W), jnp.float32, minval=-2.0, maxval=0.0),
    }

    # ---- Test 1: exact module semantics, f32 matmul path, multi-chunk fast path. ----
    x = jax.random.normal(k_x, (T, B, W), jnp.float32)
    out, hn = rglru_wrapper_forward(params, x, hx=None, batch_first=False, tc=4,
                                    precision="float32")
    out, hn = jax.block_until_ready((out, hn))

    seg0 = jnp.zeros((T, B), dtype=jnp.int32)
    h0_zero = jnp.zeros((B, W), jnp.float32)
    out_ref, hn_ref = rglru_reference(params, x, seg0, h0_zero)
    np.testing.assert_allclose(np.asarray(out), np.asarray(out_ref), rtol=1e-5, atol=1e-5)
    np.testing.assert_allclose(np.asarray(hn), np.asarray(hn_ref), rtol=1e-5, atol=1e-5)
    assert out.shape == (T, B, W) and hn.shape == (B, W)

    # ---- Test 2: general RG-LRU path, f32: mixed fast/slow chunks, per-row resets,
    #              nonzero h0, time padding + carry masking. ----
    T2 = 10
    xb = jax.random.normal(k_x2, (T2, B, W), jnp.float32)
    # chunk0 (t=0..3): all reset (fast); chunk1 (t=4..7): non-reset + one reset (slow);
    # chunk2 (t=8..9 + 2 pad): all reset with padding (fast, last chunk).
    seg_t = jnp.array([0, 0, 0, 0, 1, 2, 3, 0, 0, 0], dtype=jnp.int32)
    segb = jnp.broadcast_to(seg_t[:, None], (T2, B))
    h0b = jax.random.normal(k_h0, (B, W), jnp.float32)
    yb, hnb = rglru_forward(xb, segb, h0b, params["w_i"], params["b_i"],
                            params["w_a"], params["b_a"], params["a_param"],
                            tc=4, precision="float32")
    yb, hnb = jax.block_until_ready((yb, hnb))
    yb_ref, hnb_ref = rglru_reference(params, xb, segb, h0b)
    np.testing.assert_allclose(np.asarray(yb), np.asarray(yb_ref), rtol=1e-5, atol=1e-5)
    np.testing.assert_allclose(np.asarray(hnb), np.asarray(hnb_ref), rtol=1e-5, atol=1e-5)

    # ---- Test 3: default bf16-MXU path (perf configuration), relaxed tolerance. ----
    out16, hn16 = rglru_wrapper_forward(params, x, hx=None, batch_first=False)
    out16, hn16 = jax.block_until_ready((out16, hn16))
    np.testing.assert_allclose(np.asarray(out16), np.asarray(out_ref), rtol=3e-2, atol=3e-2)
    np.testing.assert_allclose(np.asarray(hn16), np.asarray(hn_ref), rtol=3e-2, atol=3e-2)

    print("KERNEL_OK")
</pallas_src>

<mosaic_0001>
module attributes {stable_mosaic.version = 11 : i64} {
  func.func @_rglru_kernel(%arg0: i32, %arg1: memref<2xi32, #tpu.memory_space<smem>>, %arg2: memref<8x128xf32, #tpu.memory_space<vmem>>, %arg3: memref<8x1xi32, #tpu.memory_space<vmem>>, %arg4: memref<2x128xf32, #tpu.memory_space<vmem>>, %arg5: memref<128x128xf32, #tpu.memory_space<vmem>>, %arg6: memref<128x128xf32, #tpu.memory_space<vmem>>, %arg7: memref<1x128xf32, #tpu.memory_space<vmem>>, %arg8: memref<1x128xf32, #tpu.memory_space<vmem>>, %arg9: memref<1x128xf32, #tpu.memory_space<vmem>>, %arg10: memref<8x128xf32, #tpu.memory_space<vmem>>, %arg11: memref<2x128xf32, #tpu.memory_space<vmem>>) attributes {dimension_semantics = [#tpu.dimension_semantics<arbitrary>], iteration_bounds = array<i64: 2>, scalar_prefetch = 1 : i64, scratch_operands = 0 : i64, tpu.core_type = #tpu.core_type<tc>, window_params = [{transform_indices = @transform_0, window_bounds = array<i64: 8, 128>}, {transform_indices = @transform_1, window_bounds = array<i64: 8, 1>}, {pipeline_mode = #tpu.pipeline_mode<synchronous>, transform_indices = @transform_2, window_bounds = array<i64: 2, 128>}, {pipeline_mode = #tpu.pipeline_mode<synchronous>, transform_indices = @transform_3, window_bounds = array<i64: 128, 128>}, {pipeline_mode = #tpu.pipeline_mode<synchronous>, transform_indices = @transform_4, window_bounds = array<i64: 128, 128>}, {pipeline_mode = #tpu.pipeline_mode<synchronous>, transform_indices = @transform_5, window_bounds = array<i64: 1, 128>}, {pipeline_mode = #tpu.pipeline_mode<synchronous>, transform_indices = @transform_6, window_bounds = array<i64: 1, 128>}, {pipeline_mode = #tpu.pipeline_mode<synchronous>, transform_indices = @transform_7, window_bounds = array<i64: 1, 128>}, {transform_indices = @transform_8, window_bounds = array<i64: 8, 128>}, {pipeline_mode = #tpu.pipeline_mode<synchronous>, transform_indices = @transform_9, window_bounds = array<i64: 2, 128>}]} {
    %c0_i32 = arith.constant 0 : i32
    %0 = arith.cmpi eq, %arg0, %c0_i32 : i32
    %1 = arith.extui %0 : i1 to i32
    %c0_i32_0 = arith.constant 0 : i32
    %2 = arith.cmpi ne, %1, %c0_i32_0 : i32
    scf.if %2 {
      %c0_10 = arith.constant 0 : index
      %c0_11 = arith.constant 0 : index
      %23 = vector.load %arg4[%c0_10, %c0_11] : memref<2x128xf32, #tpu.memory_space<vmem>>, vector<2x128xf32>
      %c0_12 = arith.constant 0 : index
      %c0_13 = arith.constant 0 : index
      %24 = vector.load %arg11[%c0_12, %c0_13] : memref<2x128xf32, #tpu.memory_space<vmem>>, vector<2x128xf32>
      tpu.vector_store %arg11[%c0_12, %c0_13], %23 {strides = array<i32>} : memref<2x128xf32, #tpu.memory_space<vmem>>, vector<2x128xf32>,
    } else {
    }
    %c0 = arith.constant 0 : index
    %c0_1 = arith.constant 0 : index
    %3 = vector.load %arg2[%c0, %c0_1] : memref<8x128xf32, #tpu.memory_space<vmem>>, vector<8x128xf32>
    %c0_2 = arith.constant 0 : index
    %c0_3 = arith.constant 0 : index
    %4 = vector.load %arg5[%c0_2, %c0_3] : memref<128x128xf32, #tpu.memory_space<vmem>>, vector<128x128xf32>
    %cst = arith.constant dense<0.000000e+00> : vector<8x128xf32>
    %5 = tpu.matmul %3, %4, %cst {dimension_numbers = #tpu.dot_dimension_numbers<[1], [0], [0], [1], [0, 0, 1, 1], [], []>} : vector<8x128xf32>, vector<128x128xf32>, vector<8x128xf32> -> vector<8x128xf32>
    %c0_4 = arith.constant 0 : index
    %c0_5 = arith.constant 0 : index
    %6 = vector.load %arg7[%c0_4, %c0_5] : memref<1x128xf32, #tpu.memory_space<vmem>>, vector<1x128xf32>
    %7 = vector.broadcast %6 : vector<1x128xf32> to vector<8x128xf32>
    %8 = arith.addf %5, %7 : vector<8x128xf32>
    %9 = arith.negf %8 : vector<8x128xf32>
    %10 = math.exp %9 : vector<8x128xf32>
    %cst_6 = arith.constant 1.000000e+00 : f32
    %11 = vector.broadcast %cst_6 : f32 to vector<8x128xf32>
    %12 = arith.addf %11, %10 : vector<8x128xf32>
    %13 = arith.divf %11, %12 : vector<8x128xf32>
    %14 = arith.mulf %3, %13 : vector<8x128xf32>
    %15 = arith.index_cast %arg0 : i32 to index
    %16 = memref.load %arg1[%15] : memref<2xi32, #tpu.memory_space<smem>>
    %c0_i32_7 = arith.constant 0 : i32
    %17 = arith.cmpi ne, %16, %c0_i32_7 : i32
    %true = arith.constant true
    %18 = arith.xori %17, %true : i1
    %19 = arith.extui %18 : i1 to i32
    %c0_i32_8 = arith.constant 0 : i32
    %20 = arith.cmpi ne, %19, %c0_i32_8 : i32
    scf.if %20 {
      %c0_10 = arith.constant 0 : index
      %c0_11 = arith.constant 0 : index
      %23 = vector.load %arg10[%c0_10, %c0_11] : memref<8x128xf32, #tpu.memory_space<vmem>>, vector<8x128xf32>
      tpu.vector_store %arg10[%c0_10, %c0_11], %14 {strides = array<i32>} : memref<8x128xf32, #tpu.memory_space<vmem>>, vector<8x128xf32>,
      %24 = vector.extract_strided_slice %14 {offsets = [6, 0], sizes = [2, 128], strides = [1, 1]} : vector<8x128xf32> to vector<2x128xf32>
      %c0_12 = arith.constant 0 : index
      %c0_13 = arith.constant 0 : index
      %25 = vector.load %arg11[%c0_12, %c0_13] : memref<2x128xf32, #tpu.memory_space<vmem>>, vector<2x128xf32>
      tpu.vector_store %arg11[%c0_12, %c0_13], %24 {strides = array<i32>} : memref<2x128xf32, #tpu.memory_space<vmem>>, vector<2x128xf32>,
    } else {
    }
    %21 = arith.extui %17 : i1 to i32
    %c0_i32_9 = arith.constant 0 : i32
    %22 = arith.cmpi ne, %21, %c0_i32_9 : i32
    scf.if %22 {
      %c0_10 = arith.constant 0 : index
      %c0_11 = arith.constant 0 : index
      %23 = vector.load %arg6[%c0_10, %c0_11] : memref<128x128xf32, #tpu.memory_space<vmem>>, vector<128x128xf32>
      %cst_12 = arith.constant dense<0.000000e+00> : vector<8x128xf32>
      %24 = tpu.matmul %3, %23, %cst_12 {dimension_numbers = #tpu.dot_dimension_numbers<[1], [0], [0], [1], [0, 0, 1, 1], [], []>} : vector<8x128xf32>, vector<128x128xf32>, vector<8x128xf32> -> vector<8x128xf32>
      %c0_13 = arith.constant 0 : index
      %c0_14 = arith.constant 0 : index
      %25 = vector.load %arg8[%c0_13, %c0_14] : memref<1x128xf32, #tpu.memory_space<vmem>>, vector<1x128xf32>
      %26 = vector.broadcast %25 : vector<1x128xf32> to vector<8x128xf32>
      %27 = arith.addf %24, %26 : vector<8x128xf32>
      %28 = arith.negf %27 : vector<8x128xf32>
      %29 = math.exp %28 : vector<8x128xf32>
      %cst_15 = arith.constant 1.000000e+00 : f32
      %30 = vector.broadcast %cst_15 : f32 to vector<8x128xf32>
      %31 = arith.addf %30, %29 : vector<8x128xf32>
      %32 = arith.divf %30, %31 : vector<8x128xf32>
      %c0_16 = arith.constant 0 : index
      %c0_17 = arith.constant 0 : index
      %33 = vector.load %arg9[%c0_16, %c0_17] : memref<1x128xf32, #tpu.memory_space<vmem>>, vector<1x128xf32>
      %34 = vector.broadcast %33 : vector<1x128xf32> to vector<8x128xf32>
      %35 = arith.mulf %32, %34 : vector<8x128xf32>
      %36 = math.exp %35 : vector<8x128xf32>
      %37 = arith.mulf %36, %36 : vector<8x128xf32>
      %c0_18 = arith.constant 0 : index
      %c0_19 = arith.constant 0 : index
      %38 = vector.load %arg3[%c0_18, %c0_19] : memref<8x1xi32, #tpu.memory_space<vmem>>, vector<8x1xi32>
      %c0_i32_20 = arith.constant 0 : i32
      %39 = vector.broadcast %c0_i32_20 : i32 to vector<8x1xi32>
      %40 = arith.cmpi eq, %38, %39 : vector<8x1xi32>
      %cst_21 = arith.constant 1.000000e+00 : f32
      %41 = vector.broadcast %cst_21 : f32 to vector<8x128xf32>
      %42 = arith.subf %41, %37 : vector<8x128xf32>
      %43 = math.sqrt %42 : vector<8x128xf32>
      %cst_22 = arith.constant 1.000000e+00 : f32
      %44 = vector.shape_cast %40 : vector<8x1xi1> to vector<8x1xi1>
      %45 = vector.broadcast %44 : vector<8x1xi1> to vector<8x128xi1>
      %46 = vector.broadcast %cst_22 : f32 to vector<8x128xf32>
      %47 = arith.select %45, %46, %43 : vector<8x128xi1>, vector<8x128xf32>
      %48 = arith.mulf %14, %47 : vector<8x128xf32>
      %cst_23 = arith.constant 0.000000e+00 : f32
      %49 = vector.shape_cast %40 : vector<8x1xi1> to vector<8x1xi1>
      %50 = vector.broadcast %49 : vector<8x1xi1> to vector<8x128xi1>
      %51 = vector.broadcast %cst_23 : f32 to vector<8x128xf32>
      %52 = arith.select %50, %51, %36 : vector<8x128xi1>, vector<8x128xf32>
      %c0_24 = arith.constant 0 : index
      %c0_25 = arith.constant 0 : index
      %53 = vector.load %arg11[%c0_24, %c0_25] : memref<2x128xf32, #tpu.memory_space<vmem>>, vector<2x128xf32>
      %54 = vector.extract_strided_slice %52 {offsets = [0, 0], sizes = [2, 128], strides = [1, 1]} : vector<8x128xf32> to vector<2x128xf32>
      %55 = arith.mulf %54, %53 : vector<2x128xf32>
      %56 = vector.extract_strided_slice %48 {offsets = [0, 0], sizes = [2, 128], strides = [1, 1]} : vector<8x128xf32> to vector<2x128xf32>
      %57 = arith.addf %55, %56 : vector<2x128xf32>
      %58 = vector.extract_strided_slice %52 {offsets = [2, 0], sizes = [2, 128], strides = [1, 1]} : vector<8x128xf32> to vector<2x128xf32>
      %59 = arith.mulf %58, %57 : vector<2x128xf32>
      %60 = vector.extract_strided_slice %48 {offsets = [2, 0], sizes = [2, 128], strides = [1, 1]} : vector<8x128xf32> to vector<2x128xf32>
      %61 = arith.addf %59, %60 : vector<2x128xf32>
      %62 = vector.extract_strided_slice %52 {offsets = [4, 0], sizes = [2, 128], strides = [1, 1]} : vector<8x128xf32> to vector<2x128xf32>
      %63 = arith.mulf %62, %61 : vector<2x128xf32>
      %64 = vector.extract_strided_slice %48 {offsets = [4, 0], sizes = [2, 128], strides = [1, 1]} : vector<8x128xf32> to vector<2x128xf32>
      %65 = arith.addf %63, %64 : vector<2x128xf32>
      %66 = vector.extract_strided_slice %52 {offsets = [6, 0], sizes = [2, 128], strides = [1, 1]} : vector<8x128xf32> to vector<2x128xf32>
      %67 = arith.mulf %66, %65 : vector<2x128xf32>
      %68 = vector.extract_strided_slice %48 {offsets = [6, 0], sizes = [2, 128], strides = [1, 1]} : vector<8x128xf32> to vector<2x128xf32>
      %69 = arith.addf %67, %68 : vector<2x128xf32>
      %70 = tpu.concatenate %57, %61, %65, %69 in 0 : vector<2x128xf32>, vector<2x128xf32>, vector<2x128xf32>, vector<2x128xf32> -> vector<8x128xf32>
      %c0_26 = arith.constant 0 : index
      %c0_27 = arith.constant 0 : index
      %71 = vector.load %arg10[%c0_26, %c0_27] : memref<8x128xf32, #tpu.memory_space<vmem>>, vector<8x128xf32>
      tpu.vector_store %arg10[%c0_26, %c0_27], %70 {strides = array<i32>} : memref<8x128xf32, #tpu.memory_space<vmem>>, vector<8x128xf32>,
      %c0_28 = arith.constant 0 : index
      %c0_29 = arith.constant 0 : index
      %72 = vector.load %arg11[%c0_28, %c0_29] : memref<2x128xf32, #tpu.memory_space<vmem>>, vector<2x128xf32>
      tpu.vector_store %arg11[%c0_28, %c0_29], %69 {strides = array<i32>} : memref<2x128xf32, #tpu.memory_space<vmem>>, vector<2x128xf32>,
    } else {
    }
    return
  }
  func.func @transform_0(%arg0: i32, %arg1: memref<2xi32, #tpu.memory_space<smem>>) -> (i32, i32) {
    %c0_i32 = arith.constant 0 : i32
    %c0_i32_0 = arith.constant 0 : i32
    return %arg0, %c0_i32 : i32, i32
  }
  func.func @transform_1(%arg0: i32, %arg1: memref<2xi32, #tpu.memory_space<smem>>) -> (i32, i32) {
    %c0_i32 = arith.constant 0 : i32
    %c0_i32_0 = arith.constant 0 : i32
    return %arg0, %c0_i32 : i32, i32
  }
  func.func @transform_2(%arg0: i32, %arg1: memref<2xi32, #tpu.memory_space<smem>>) -> (i32, i32) {
    %c0_i32 = arith.constant 0 : i32
    %c0_i32_0 = arith.constant 0 : i32
    %c0_i32_1 = arith.constant 0 : i32
    return %c0_i32, %c0_i32_0 : i32, i32
  }
  func.func @transform_3(%arg0: i32, %arg1: memref<2xi32, #tpu.memory_space<smem>>) -> (i32, i32) {
    %c0_i32 = arith.constant 0 : i32
    %c0_i32_0 = arith.constant 0 : i32
    %c0_i32_1 = arith.constant 0 : i32
    return %c0_i32, %c0_i32_0 : i32, i32
  }
  func.func @transform_4(%arg0: i32, %arg1: memref<2xi32, #tpu.memory_space<smem>>) -> (i32, i32) {
    %c0_i32 = arith.constant 0 : i32
    %c0_i32_0 = arith.constant 0 : i32
    %c0_i32_1 = arith.constant 0 : i32
    return %c0_i32, %c0_i32_0 : i32, i32
  }
  func.func @transform_5(%arg0: i32, %arg1: memref<2xi32, #tpu.memory_space<smem>>) -> (i32, i32) {
    %c0_i32 = arith.constant 0 : i32
    %c0_i32_0 = arith.constant 0 : i32
    %c0_i32_1 = arith.constant 0 : i32
    return %c0_i32, %c0_i32_0 : i32, i32
  }
  func.func @transform_6(%arg0: i32, %arg1: memref<2xi32, #tpu.memory_space<smem>>) -> (i32, i32) {
    %c0_i32 = arith.constant 0 : i32
    %c0_i32_0 = arith.constant 0 : i32
    %c0_i32_1 = arith.constant 0 : i32
    return %c0_i32, %c0_i32_0 : i32, i32
  }
  func.func @transform_7(%arg0: i32, %arg1: memref<2xi32, #tpu.memory_space<smem>>) -> (i32, i32) {
    %c0_i32 = arith.constant 0 : i32
    %c0_i32_0 = arith.constant 0 : i32
    %c0_i32_1 = arith.constant 0 : i32
    return %c0_i32, %c0_i32_0 : i32, i32
  }
  func.func @transform_8(%arg0: i32, %arg1: memref<2xi32, #tpu.memory_space<smem>>) -> (i32, i32) {
    %c0_i32 = arith.constant 0 : i32
    %c0_i32_0 = arith.constant 0 : i32
    return %arg0, %c0_i32 : i32, i32
  }
  func.func @transform_9(%arg0: i32, %arg1: memref<2xi32, #tpu.memory_space<smem>>) -> (i32, i32) {
    %c0_i32 = arith.constant 0 : i32
    %c0_i32_0 = arith.constant 0 : i32
    %c0_i32_1 = arith.constant 0 : i32
    return %c0_i32, %c0_i32_0 : i32, i32
  }
}

</mosaic_0001>

<llo_original>
// kernel: rglru_forward.1
$region0: #{rglru_forward.1}
  #allocation0 [shape = 'u32[]', space=smem, size = 0x4, offset = 0x4, fixed_abs, tag = 'smem constant byte address 0x4 - core index']
  #allocation1 [shape = 'u32[144,128]{1,0:T(1,128)}', space=vmem, size = 0x12000, scoped, tag = 'internal scratch']
  #allocation2 [shape = 's32[1]{0}', space=sflag, size = 0x4, scoped, tag = 'scoped memory for rglru_forward.1']
  #allocation3 [shape = 'u8[512]{0}', space=smem, size = 0x200, scoped, tag = 'prefetched SMEM operand 0']
  %s0 = inlined_call_operand.vmem [shape: s32[2], index: 0, kind: input, shape index: {}]
  %s1 = inlined_call_operand.vmem [shape: f32[16,128], index: 1, kind: input, shape index: {}]
  %s2 = inlined_call_operand.vmem [shape: s32[16,1], index: 2, kind: input, shape index: {}]
  %s3 = inlined_call_operand.vmem [shape: f32[2,128], index: 3, kind: input, shape index: {}]
  %s4 = inlined_call_operand.vmem [shape: f32[128,128], index: 4, kind: input, shape index: {}]
  %s5 = inlined_call_operand.vmem [shape: f32[128,128], index: 5, kind: input, shape index: {}]
  %s6 = inlined_call_operand.vmem [shape: f32[1,128], index: 6, kind: input, shape index: {}]
  %s7 = inlined_call_operand.vmem [shape: f32[1,128], index: 7, kind: input, shape index: {}]
  %s8 = inlined_call_operand.vmem [shape: f32[1,128], index: 8, kind: input, shape index: {}]
  %s9 = inlined_call_operand.hbm [shape: f32[16,128], index: 9, kind: output, shape index: {0}]
  %s10 = inlined_call_operand.hbm [shape: f32[2,128], index: 10, kind: output, shape index: {1}]
  %11 = xla_tuple %s9, %s10
  %s12 = sld [smem:[#allocation0]]
  $region85: #{rglru_forward.1} parent=0
    _
  %s14 = ssub.s32 1, %s12
  %s15 = scalar_select 0, %s14, %s12
  %s16 = sshll.u32 %s0, 4
  %s17 = int_to_ptr.vmem [resolvable:$true] %s16
  %19 = dma.vmem_to_smem %s17, 16, [#allocation3], [#allocation2]
  %20 = dma.done [#allocation2], 16
  %21 = sfence
  $region1: #{rglru_forward.1} parent=0
    #allocation4 [shape = 'u8[8192]{0}', space=vmem, size = 0x2000, scoped, tag = 'output window, operand 0']
    #allocation5 [shape = 's32[2]{0}', space=sflag, size = 0x8, scoped, tag = 'scoped memory for rglru_forward.1']
    #allocation6 [shape = 'u8[1024]{0}', space=vmem, size = 0x400, scoped, tag = 'output window, operand 1, single buffered']
    #allocation7 [shape = 's32[1]{0}', space=sflag, size = 0x4, scoped, tag = 'scoped memory for rglru_forward.1']
    %22 = vsyncpa [#allocation5], 0
    %s23 = scalar_lea.sflag [#allocation5], 1
    %24 = vsyncpa %s23, 0
    %25 = vsyncpa [#allocation7], 0
    loop: start=0, step=1, limit=4
    $region2: #{rglru_forward.1} parent=1 // loop_pre_header
      _
    $region3: #{rglru_forward.1} parent=1 // loop_header
      %s27 = sphi 0, %s31
      %p28 = scmp.ge.s32.totalorder %s27, 4
      %s37 = sphi 0, %s39
      %s40 = sphi 0, %s37
      %s41 = sphi 0, %s40
      %s57 = sphi 0, %s41
      %s63 = sphi 0, %s65
      %s66 = sphi 0, %s63
      %s67 = sphi 0, %s66
      %s83 = sphi 0, %s67
      %s87 = sphi 0, %s87
      %s89 = sphi 0, %s87
      %s90 = sphi 0, %s89
      %s104 = sphi 0, %s90
      %s108 = sphi 0, %s108
      %s110 = sphi 0, %s108
      %s111 = sphi 0, %s110
      %s125 = sphi 0, %s111
      %s129 = sphi 0, %s129
      %s131 = sphi 0, %s129
      %s132 = sphi 0, %s131
      %s146 = sphi 0, %s132
      %s150 = sphi 0, %s150
      %s152 = sphi 0, %s150
      %s153 = sphi 0, %s152
      %s167 = sphi 0, %s153
      %s171 = sphi 0, %s171
      %s173 = sphi 0, %s171
      %s174 = sphi 0, %s173
      %s188 = sphi 0, %s174
      %s192 = sphi 0, %s192
      %s194 = sphi 0, %s192
      %s195 = sphi 0, %s194
      %s209 = sphi 0, %s195
      %s215 = sphi 0, %s217
      %s218 = sphi 0, %s215
      %s219 = sphi 0, %s218
      %s235 = sphi 0, %s219
      %s239 = sphi 0, %s239
      %s241 = sphi 0, %s239
      %s242 = sphi 0, %s241
      %s256 = sphi 0, %s242
    $region4: #{rglru_forward.1} parent=1 // loop_header_branch
      %30 = sbr.rel (%p28) target = $region8
    $region5: #{rglru_forward.1} parent=1 // loop_body
      %s32 = ssub.s32 %s27, 1
      %s33 = ssub.s32 %s27, 2
      %s34 = sadd.s32 %s27, 1
      %s35 = ssub.s32 %s27, %s34
      %p36 = scmp.eq.s32.totalorder %s35, 0
      %s38 = sadd.s32 %s37, 1
      %s39 = scalar_select %p36, %s37, %s38
      %p42 = pneg %p36
      %p43 = scmp.eq.s32.totalorder %s27, 1
      %p44 = por %p42, %p43
      %p45 = scmp.ne.s32.totalorder %s37, %s40
      %p46 = scmp.eq.s32.totalorder %s27, 0
      %p47 = por %p45, %p46
      %p48 = scmp.ne.s32.totalorder %s37, %s40
      %p49 = scmp.eq.s32.totalorder %s32, 1
      %p50 = por %p48, %p49
      %p51 = scmp.ne.s32.totalorder %s40, %s41
      %p52 = scmp.eq.s32.totalorder %s32, 0
      %p53 = por %p51, %p52
      %p54 = scmp.ne.s32.totalorder %s40, %s41
      %p55 = scmp.eq.s32.totalorder %s33, 1
      %p56 = por %p54, %p55
      %p58 = scmp.ne.s32.totalorder %s41, %s57
      %p59 = scmp.eq.s32.totalorder %s33, 0
      %p60 = por %p58, %p59
      %s61 = ssub.s32 %s27, %s34
      %p62 = scmp.eq.s32.totalorder %s61, 0
      %s64 = sadd.s32 %s63, 1
      %s65 = scalar_select %p62, %s63, %s64
      %p68 = pneg %p62
      %p69 = scmp.eq.s32.totalorder %s27, 1
      %p70 = por %p68, %p69
      %p71 = scmp.ne.s32.totalorder %s63, %s66
      %p72 = scmp.eq.s32.totalorder %s27, 0
      %p73 = por %p71, %p72
      %p74 = scmp.ne.s32.totalorder %s63, %s66
      %p75 = scmp.eq.s32.totalorder %s32, 1
      %p76 = por %p74, %p75
      %p77 = scmp.ne.s32.totalorder %s66, %s67
      %p78 = scmp.eq.s32.totalorder %s32, 0
      %p79 = por %p77, %p78
      %p80 = scmp.ne.s32.totalorder %s66, %s67
      %p81 = scmp.eq.s32.totalorder %s33, 1
      %p82 = por %p80, %p81
      %p84 = scmp.ne.s32.totalorder %s67, %s83
      %p85 = scmp.eq.s32.totalorder %s33, 0
      %p86 = por %p84, %p85
      %s88 = sadd.s32 %s87, 1
      %p91 = scmp.eq.s32.totalorder %s27, 1
      %p92 = scmp.ne.s32.totalorder %s87, %s89
      %p93 = scmp.eq.s32.totalorder %s27, 0
      %p94 = por %p92, %p93
      %p95 = scmp.ne.s32.totalorder %s87, %s89
      %p96 = scmp.eq.s32.totalorder %s32, 1
      %p97 = por %p95, %p96
      %p98 = scmp.ne.s32.totalorder %s89, %s90
      %p99 = scmp.eq.s32.totalorder %s32, 0
      %p100 = por %p98, %p99
      %p101 = scmp.ne.s32.totalorder %s89, %s90
      %p102 = scmp.eq.s32.totalorder %s33, 1
      %p103 = por %p101, %p102
      %p105 = scmp.ne.s32.totalorder %s90, %s104
      %p106 = scmp.eq.s32.totalorder %s33, 0
      %p107 = por %p105, %p106
      %s109 = sadd.s32 %s108, 1
      %p112 = scmp.eq.s32.totalorder %s27, 1
      %p113 = scmp.ne.s32.totalorder %s108, %s110
      %p114 = scmp.eq.s32.totalorder %s27, 0
      %p115 = por %p113, %p114
      %p116 = scmp.ne.s32.totalorder %s108, %s110
      %p117 = scmp.eq.s32.totalorder %s32, 1
      %p118 = por %p116, %p117
      %p119 = scmp.ne.s32.totalorder %s110, %s111
      %p120 = scmp.eq.s32.totalorder %s32, 0
      %p121 = por %p119, %p120
      %p122 = scmp.ne.s32.totalorder %s110, %s111
      %p123 = scmp.eq.s32.totalorder %s33, 1
      %p124 = por %p122, %p123
      %p126 = scmp.ne.s32.totalorder %s111, %s125
      %p127 = scmp.eq.s32.totalorder %s33, 0
      %p128 = por %p126, %p127
      %s130 = sadd.s32 %s129, 1
      %p133 = scmp.eq.s32.totalorder %s27, 1
      %p134 = scmp.ne.s32.totalorder %s129, %s131
      %p135 = scmp.eq.s32.totalorder %s27, 0
      %p136 = por %p134, %p135
      %p137 = scmp.ne.s32.totalorder %s129, %s131
      %p138 = scmp.eq.s32.totalorder %s32, 1
      %p139 = por %p137, %p138
      %p140 = scmp.ne.s32.totalorder %s131, %s132
      %p141 = scmp.eq.s32.totalorder %s32, 0
      %p142 = por %p140, %p141
      %p143 = scmp.ne.s32.totalorder %s131, %s132
      %p144 = scmp.eq.s32.totalorder %s33, 1
      %p145 = por %p143, %p144
      %p147 = scmp.ne.s32.totalorder %s132, %s146
      %p148 = scmp.eq.s32.totalorder %s33, 0
      %p149 = por %p147, %p148
      %s151 = sadd.s32 %s150, 1
      %p154 = scmp.eq.s32.totalorder %s27, 1
      %p155 = scmp.ne.s32.totalorder %s150, %s152
      %p156 = scmp.eq.s32.totalorder %s27, 0
      %p157 = por %p155, %p156
      %p158 = scmp.ne.s32.totalorder %s150, %s152
      %p159 = scmp.eq.s32.totalorder %s32, 1
      %p160 = por %p158, %p159
      %p161 = scmp.ne.s32.totalorder %s152, %s153
      %p162 = scmp.eq.s32.totalorder %s32, 0
      %p163 = por %p161, %p162
      %p164 = scmp.ne.s32.totalorder %s152, %s153
      %p165 = scmp.eq.s32.totalorder %s33, 1
      %p166 = por %p164, %p165
      %p168 = scmp.ne.s32.totalorder %s153, %s167
      %p169 = scmp.eq.s32.totalorder %s33, 0
      %p170 = por %p168, %p169
      %s172 = sadd.s32 %s171, 1
      %p175 = scmp.eq.s32.totalorder %s27, 1
      %p176 = scmp.ne.s32.totalorder %s171, %s173
      %p177 = scmp.eq.s32.totalorder %s27, 0
      %p178 = por %p176, %p177
      %p179 = scmp.ne.s32.totalorder %s171, %s173
      %p180 = scmp.eq.s32.totalorder %s32, 1
      %p181 = por %p179, %p180
      %p182 = scmp.ne.s32.totalorder %s173, %s174
      %p183 = scmp.eq.s32.totalorder %s32, 0
      %p184 = por %p182, %p183
      %p185 = scmp.ne.s32.totalorder %s173, %s174
      %p186 = scmp.eq.s32.totalorder %s33, 1
      %p187 = por %p185, %p186
      %p189 = scmp.ne.s32.totalorder %s174, %s188
      %p190 = scmp.eq.s32.totalorder %s33, 0
      %p191 = por %p189, %p190
      %s193 = sadd.s32 %s192, 1
      %p196 = scmp.eq.s32.totalorder %s27, 1
      %p197 = scmp.ne.s32.totalorder %s192, %s194
      %p198 = scmp.eq.s32.totalorder %s27, 0
      %p199 = por %p197, %p198
      %p200 = scmp.ne.s32.totalorder %s192, %s194
      %p201 = scmp.eq.s32.totalorder %s32, 1
      %p202 = por %p200, %p201
      %p203 = scmp.ne.s32.totalorder %s194, %s195
      %p204 = scmp.eq.s32.totalorder %s32, 0
      %p205 = por %p203, %p204
      %p206 = scmp.ne.s32.totalorder %s194, %s195
      %p207 = scmp.eq.s32.totalorder %s33, 1
      %p208 = por %p206, %p207
      %p210 = scmp.ne.s32.totalorder %s195, %s209
      %p211 = scmp.eq.s32.totalorder %s33, 0
      %p212 = por %p210, %p211
      %s213 = ssub.s32 %s27, %s34
      %p214 = scmp.eq.s32.totalorder %s213, 0
      %s216 = sadd.s32 %s215, 1
      %s217 = scalar_select %p214, %s215, %s216
      %p220 = pneg %p214
      %p221 = scmp.eq.s32.totalorder %s27, 1
      %p222 = por %p220, %p221
      %p223 = scmp.ne.s32.totalorder %s215, %s218
      %p224 = scmp.eq.s32.totalorder %s27, 0
      %p225 = por %p223, %p224
      %p226 = scmp.ne.s32.totalorder %s215, %s218
      %p227 = scmp.eq.s32.totalorder %s32, 1
      %p228 = por %p226, %p227
      %p229 = scmp.ne.s32.totalorder %s218, %s219
      %p230 = scmp.eq.s32.totalorder %s32, 0
      %p231 = por %p229, %p230
      %p232 = scmp.ne.s32.totalorder %s218, %s219
      %p233 = scmp.eq.s32.totalorder %s33, 1
      %p234 = por %p232, %p233
      %p236 = scmp.ne.s32.totalorder %s219, %s235
      %p237 = scmp.eq.s32.totalorder %s33, 0
      %p238 = por %p236, %p237
      %s240 = sadd.s32 %s239, 1
      %p243 = scmp.eq.s32.totalorder %s27, 1
      %p244 = scmp.ne.s32.totalorder %s239, %s241
      %p245 = scmp.eq.s32.totalorder %s27, 0
      %p246 = por %p244, %p245
      %p247 = scmp.ne.s32.totalorder %s239, %s241
      %p248 = scmp.eq.s32.totalorder %s32, 1
      %p249 = por %p247, %p248
      %p250 = scmp.ne.s32.totalorder %s241, %s242
      %p251 = scmp.eq.s32.totalorder %s32, 0
      %p252 = por %p250, %p251
      %p253 = scmp.ne.s32.totalorder %s241, %s242
      %p254 = scmp.eq.s32.totalorder %s33, 1
      %p255 = por %p253, %p254
      %p257 = scmp.ne.s32.totalorder %s242, %s256
      %p258 = scmp.eq.s32.totalorder %s33, 0
      %p259 = por %p257, %p258
      %p260 = scmp.le.s32.totalorder 1, %s27
      %p261 = scmp.lt.s32.totalorder %s27, 3
      %p262 = pnand %p260, %p261
      %p263 = pneg %p262
      // Predicated region
      $region9: #{rglru_forward.1} parent=5 // pred_check
        _
      $region10: #{rglru_forward.1} parent=5 // pred_check_branch
        %265 = sbr.rel (%p262) target = $region12
      $region11: #{rglru_forward.1} parent=5 // pred_region
        %s266 = ssub.s32 %s27, 1
        // Predicated region
        $region13: #{rglru_forward.1} parent=11 // pred_check
          %p267 = pneg %p100
        $region14: #{rglru_forward.1} parent=11 // pred_check_branch
          %269 = sbr.rel (%p267) target = $region16
        $region15: #{rglru_forward.1} parent=11 // pred_region
          _
        $region16: #{rglru_forward.1} parent=11 // pred_fallthru
          _
        // Predicated region
        $region17: #{rglru_forward.1} parent=11 // pred_check
          %p270 = pneg %p121
        $region18: #{rglru_forward.1} parent=11 // pred_check_branch
          %272 = sbr.rel (%p270) target = $region20
        $region19: #{rglru_forward.1} parent=11 // pred_region
          _
        $region20: #{rglru_forward.1} parent=11 // pred_fallthru
          _
        // Predicated region
        $region21: #{rglru_forward.1} parent=11 // pred_check
          %p273 = pneg %p142
        $region22: #{rglru_forward.1} parent=11 // pred_check_branch
          %275 = sbr.rel (%p273) target = $region24
        $region23: #{rglru_forward.1} parent=11 // pred_region
          _
        $region24: #{rglru_forward.1} parent=11 // pred_fallthru
          _
        // Predicated region
        $region25: #{rglru_forward.1} parent=11 // pred_check
          %p276 = pneg %p163
        $region26: #{rglru_forward.1} parent=11 // pred_check_branch
          %278 = sbr.rel (%p276) target = $region28
        $region27: #{rglru_forward.1} parent=11 // pred_region
          _
        $region28: #{rglru_forward.1} parent=11 // pred_fallthru
          _
        // Predicated region
        $region29: #{rglru_forward.1} parent=11 // pred_check
          %p279 = pneg %p184
        $region30: #{rglru_forward.1} parent=11 // pred_check_branch
          %281 = sbr.rel (%p279) target = $region32
        $region31: #{rglru_forward.1} parent=11 // pred_region
          _
        $region32: #{rglru_forward.1} parent=11 // pred_fallthru
          _
        // Predicated region
        $region33: #{rglru_forward.1} parent=11 // pred_check
          %p282 = pneg %p205
        $region34: #{rglru_forward.1} parent=11 // pred_check_branch
          %284 = sbr.rel (%p282) target = $region36
        $region35: #{rglru_forward.1} parent=11 // pred_region
          _
        $region36: #{rglru_forward.1} parent=11 // pred_fallthru
          _
      $region12: #{rglru_forward.1} parent=5 // pred_fallthru
        _
      %p285 = scmp.lt.s32.totalorder %s27, 2
      // Predicated region
      $region37: #{rglru_forward.1} parent=5 // pred_check
        %p286 = pneg %p285
      $region38: #{rglru_forward.1} parent=5 // pred_check_branch
        %288 = sbr.rel (%p286) target = $region40
      $region39: #{rglru_forward.1} parent=5 // pred_region
        // Predicated region
        $region41: #{rglru_forward.1} parent=39 // pred_check
          %p289 = pneg %p47
        $region42: #{rglru_forward.1} parent=39 // pred_check_branch
          %291 = sbr.rel (%p289) target = $region44
        $region43: #{rglru_forward.1} parent=39 // pred_region
          %p292 = scmp.lt.s32.totalorder %s27, 1
          %s293 = scalar_select %p292, %s27, 1
          %s294 = smul.addr %s293, 8
          %s295 = scalar_lea.vmem %s1, %s294
        $region44: #{rglru_forward.1} parent=39 // pred_fallthru
          _
        // Predicated region
        $region45: #{rglru_forward.1} parent=39 // pred_check
          %p296 = pneg %p73
        $region46: #{rglru_forward.1} parent=39 // pred_check_branch
          %298 = sbr.rel (%p296) target = $region48
        $region47: #{rglru_forward.1} parent=39 // pred_region
          %p299 = scmp.lt.s32.totalorder %s27, 1
          %s300 = scalar_select %p299, %s27, 1
          %s301 = smul.addr %s300, 8
          %s302 = scalar_lea.vmem %s2, %s301
        $region48: #{rglru_forward.1} parent=39 // pred_fallthru
          _
      $region40: #{rglru_forward.1} parent=5 // pred_fallthru
        _
      %p303 = scmp.le.s32.totalorder 1, %s27
      %p304 = scmp.lt.s32.totalorder %s27, 3
      %p305 = pnand %p303, %p304
      %p306 = pneg %p305
      // Predicated region
      $region49: #{rglru_forward.1} parent=5 // pred_check
        _
      $region50: #{rglru_forward.1} parent=5 // pred_check_branch
        %308 = sbr.rel (%p305) target = $region52
      $region51: #{rglru_forward.1} parent=5 // pred_region
        %s309 = ssub.s32 %s27, 1
        %p310 = scmp.lt.s32.totalorder %s32, 1
        %s311 = scalar_select %p310, %s32, 1
        %s312 = smul.addr %s311, 8
        %s313 = scalar_lea.vmem %s1, %s312
        %p314 = pneg %p53
        %p315 = pneg %p50
        %p316 = scmp.lt.s32.totalorder %s32, 1
        %s317 = scalar_select %p316, %s32, 1
        %s318 = smul.addr %s317, 8
        %s319 = scalar_lea.vmem %s2, %s318
        %p320 = pneg %p79
        %p321 = pneg %p76
        %p322 = pneg %p100
        %p323 = pneg %p97
        %p324 = pneg %p121
        %p325 = pneg %p118
        %p326 = pneg %p142
        %p327 = pneg %p139
        %p328 = pneg %p163
        %p329 = pneg %p160
        %p330 = pneg %p184
        %p331 = pneg %p181
        %p332 = pneg %p205
        %p333 = pneg %p202
        %p334 = pneg %p231
        %p335 = pneg %p228
        %s336 = sand.u32 %s218, 1
        %s337 = scalar_lea.sflag [#allocation5], %s336
        %s338 = sand.u32 %s218, 1
        %s339 = smul.addr %s338, 8
        %s340 = scalar_lea.vmem [#allocation4], %s339
        %p341 = pneg %p252
        %p342 = pneg %p249
        %p343 = scmp.lt.s32.totalorder %s32, 1
        %s344 = scalar_select %p343, %s32, 1
        %s345 = smul.addr %s344, 8
        %s346 = scalar_lea.vmem %s1, %s345
        %p347 = scmp.lt.s32.totalorder %s32, 1
        %s348 = scalar_select %p347, %s32, 1
        %s349 = smul.addr %s348, 8
        %s350 = scalar_lea.vmem %s2, %s349
        %p351 = scmp.eq.s32.totalorder %s32, 0
        // Predicated region
        $region53: #{rglru_forward.1} parent=51 // pred_check
          %p352 = pneg %p351
        $region54: #{rglru_forward.1} parent=51 // pred_check_branch
          %354 = sbr.rel (%p352) target = $region56
        $region55: #{rglru_forward.1} parent=51 // pred_region
          %v355 = vld [vmem:[%s3] sm:$0x3]
          %356 = vst [vmem:[#allocation6] sm:$0x3] %v355
        $region56: #{rglru_forward.1} parent=51 // pred_fallthru
          _
        %v357 = vld [vmem:[%s346] sm:$0xff]
        %v358 = vld [vmem:[%s4] sm:$0xff]
        %v359 = vld [vmem:[%s4 + $0x8] sm:$0xff]
        %v360 = vld [vmem:[%s4 + $0x10] sm:$0xff]
        %v361 = vld [vmem:[%s4 + $0x18] sm:$0xff]
        %v362 = vld [vmem:[%s4 + $0x20] sm:$0xff]
        %v363 = vld [vmem:[%s4 + $0x28] sm:$0xff]
        %v364 = vld [vmem:[%s4 + $0x30] sm:$0xff]
        %v365 = vld [vmem:[%s4 + $0x38] sm:$0xff]
        %v366 = vld [vmem:[%s4 + $0x40] sm:$0xff]
        %v367 = vld [vmem:[%s4 + $0x48] sm:$0xff]
        %v368 = vld [vmem:[%s4 + $0x50] sm:$0xff]
        %v369 = vld [vmem:[%s4 + $0x58] sm:$0xff]
        %v370 = vld [vmem:[%s4 + $0x60] sm:$0xff]
        %v371 = vld [vmem:[%s4 + $0x68] sm:$0xff]
        %v372 = vld [vmem:[%s4 + $0x70] sm:$0xff]
        %v373 = vld [vmem:[%s4 + $0x78] sm:$0xff]
        %v374 = vld [vmem:[%s6] sm:$0x1]
        %v376 = vlaneseq
        %v377 = vshrl.u32 %v376, 7
        %v378 = vsub.s32 0, %v377
        %v379 = vrot.slane %v374, %v378
        %381 = vmatprep.subr.mxu0 0.0
        %382 = vmatpush1.msra.mxu0 %v358
        %383 = vmatprep.subr.mxu0 0.0
        %384 = vmatpush1.msra.mxu0 %v359
        %385 = vmatprep.subr.mxu0 0.0
        %386 = vmatpush1.msra.mxu0 %v360
        %387 = vmatprep.subr.mxu0 0.0
        %388 = vmatpush1.msra.mxu0 %v361
        %389 = vmatprep.subr.mxu0 0.0
        %390 = vmatpush1.msra.mxu0 %v362
        %391 = vmatprep.subr.mxu0 0.0
        %392 = vmatpush1.msra.mxu0 %v363
        %393 = vmatprep.subr.mxu0 0.0
        %394 = vmatpush1.msra.mxu0 %v364
        %395 = vmatprep.subr.mxu0 0.0
        %396 = vmatpush1.msra.mxu0 %v365
        %397 = vmatprep.subr.mxu0 0.0
        %398 = vmatpush1.msra.mxu0 %v366
        %399 = vmatprep.subr.mxu0 0.0
        %400 = vmatpush1.msra.mxu0 %v367
        %401 = vmatprep.subr.mxu0 0.0
        %402 = vmatpush1.msra.mxu0 %v368
        %403 = vmatprep.subr.mxu0 0.0
        %404 = vmatpush1.msra.mxu0 %v369
        %405 = vmatprep.subr.mxu0 0.0
        %406 = vmatpush1.msra.mxu0 %v370
        %407 = vmatprep.subr.mxu0 0.0
        %408 = vmatpush1.msra.mxu0 %v371
        %409 = vmatprep.subr.mxu0 0.0
        %410 = vmatpush1.msra.mxu0 %v372
        %411 = vmatprep.subr.mxu0 0.0
        %412 = vmatpush1.msra.mxu0 %v373
        %413 = vmatprep.subr.mxu0 0.0
        %414 = vmatpush1.msra.mxu0 0.0
        %415 = vmatprep.subr.mxu0 0.0
        %416 = vmatpush1.msra.mxu0 0.0
        %417 = vmatprep.subr.mxu0 0.0
        %418 = vmatpush1.msra.mxu0 0.0
        %419 = vmatprep.subr.mxu0 0.0
        %420 = vmatpush1.msra.mxu0 0.0
        %421 = vmatprep.subr.mxu0 0.0
        %422 = vmatpush1.msra.mxu0 0.0
        %423 = vmatprep.subr.mxu0 0.0
        %424 = vmatpush1.msra.mxu0 0.0
        %425 = vmatprep.subr.mxu0 0.0
        %426 = vmatpush1.msra.mxu0 0.0
        %427 = vmatprep.subr.mxu0 0.0
        %428 = vmatpush1.msra.mxu0 0.0
        %429 = vmatprep.subr.mxu0 0.0
        %430 = vmatpush1.msra.mxu0 0.0
        %431 = vmatprep.subr.mxu0 0.0
        %432 = vmatpush1.msra.mxu0 0.0
        %433 = vmatprep.subr.mxu0 0.0
        %434 = vmatpush1.msra.mxu0 0.0
        %435 = vmatprep.subr.mxu0 0.0
        %436 = vmatpush1.msra.mxu0 0.0
        %437 = vmatprep.subr.mxu0 0.0
        %438 = vmatpush1.msra.mxu0 0.0
        %439 = vmatprep.subr.mxu0 0.0
        %440 = vmatpush1.msra.mxu0 0.0
        %441 = vmatprep.subr.mxu0 0.0
        %442 = vmatpush1.msra.mxu0 0.0
        %443 = vmatprep.subr.mxu0 0.0
        %444 = vmatpush1.msra.mxu0 0.0
        %445 = vmatprep.mubr.f32.mxu0 0.0
        %446 = vmatmul.mubr.f32.gmra.mrb[0].mxu0 %v357
        %v447 = vpop.f32.mrb[0].mxu0
        %v448 = vadd.f32 %v379, %v447
        %v449 = vpop.f32.mrb[0].mxu0
        %450 = vdwg.mxu0
        %v451 = vxor.u32 %v448, 2147483648
        %v452 = vmul.f32 %v451, 1.442695
        %v453 = vpow.pop %v452
        %v454 = vadd.f32 %v453, 1.0
        %v455 = vrcp.pop %v454
        %v456 = vmul.f32 1.0, %v455
        %v457 = vmul.f32 %v357, %v456
        %s458 = sld [smem:[#allocation3 + %s32]]
        %p459 = scmp.ne.s32.totalorder %s458, 0
        %p460 = scmp.eq.s32.totalorder %s458, 0
        // Predicated region
        $region57: #{rglru_forward.1} parent=51 // pred_check
          %p461 = pneg %p460
        $region58: #{rglru_forward.1} parent=51 // pred_check_branch
          %463 = sbr.rel (%p461) target = $region60
        $region59: #{rglru_forward.1} parent=51 // pred_region
          %464 = vst [vmem:[%s340] sm:$0xff] %v457
          %465 = vst [vmem:[#allocation6 - $0x6] sm:$0xc0] %v457
        $region60: #{rglru_forward.1} parent=51 // pred_fallthru
          _
        // Predicated region
        $region61: #{rglru_forward.1} parent=51 // pred_check
          %p466 = pneg %p459
        $region62: #{rglru_forward.1} parent=51 // pred_check_branch
          %468 = sbr.rel (%p466) target = $region64
        $region63: #{rglru_forward.1} parent=51 // pred_region
          %v469 = vld [vmem:[%s5] sm:$0xff]
          %v470 = vld [vmem:[%s5 + $0x8] sm:$0xff]
          %v471 = vld [vmem:[%s5 + $0x10] sm:$0xff]
          %v472 = vld [vmem:[%s5 + $0x18] sm:$0xff]
          %v473 = vld [vmem:[%s5 + $0x20] sm:$0xff]
          %v474 = vld [vmem:[%s5 + $0x28] sm:$0xff]
          %v475 = vld [vmem:[%s5 + $0x30] sm:$0xff]
          %v476 = vld [vmem:[%s5 + $0x38] sm:$0xff]
          %v477 = vld [vmem:[%s5 + $0x40] sm:$0xff]
          %v478 = vld [vmem:[%s5 + $0x48] sm:$0xff]
          %v479 = vld [vmem:[%s5 + $0x50] sm:$0xff]
          %v480 = vld [vmem:[%s5 + $0x58] sm:$0xff]
          %v481 = vld [vmem:[%s5 + $0x60] sm:$0xff]
          %v482 = vld [vmem:[%s5 + $0x68] sm:$0xff]
          %v483 = vld [vmem:[%s5 + $0x70] sm:$0xff]
          %v484 = vld [vmem:[%s5 + $0x78] sm:$0xff]
          %v485 = vld [vmem:[%s7] sm:$0x1]
          %v487 = vlaneseq
          %v488 = vshrl.u32 %v487, 7
          %v489 = vsub.s32 0, %v488
          %v490 = vrot.slane %v485, %v489
          %492 = vmatprep.subr.mxu0 0.0
          %493 = vmatpush1.msra.mxu0 %v469
          %494 = vmatprep.subr.mxu0 0.0
          %495 = vmatpush1.msra.mxu0 %v470
          %496 = vmatprep.subr.mxu0 0.0
          %497 = vmatpush1.msra.mxu0 %v471
          %498 = vmatprep.subr.mxu0 0.0
          %499 = vmatpush1.msra.mxu0 %v472
          %500 = vmatprep.subr.mxu0 0.0
          %501 = vmatpush1.msra.mxu0 %v473
          %502 = vmatprep.subr.mxu0 0.0
          %503 = vmatpush1.msra.mxu0 %v474
          %504 = vmatprep.subr.mxu0 0.0
          %505 = vmatpush1.msra.mxu0 %v475
          %506 = vmatprep.subr.mxu0 0.0
          %507 = vmatpush1.msra.mxu0 %v476
          %508 = vmatprep.subr.mxu0 0.0
          %509 = vmatpush1.msra.mxu0 %v477
          %510 = vmatprep.subr.mxu0 0.0
          %511 = vmatpush1.msra.mxu0 %v478
          %512 = vmatprep.subr.mxu0 0.0
          %513 = vmatpush1.msra.mxu0 %v479
          %514 = vmatprep.subr.mxu0 0.0
          %515 = vmatpush1.msra.mxu0 %v480
          %516 = vmatprep.subr.mxu0 0.0
          %517 = vmatpush1.msra.mxu0 %v481
          %518 = vmatprep.subr.mxu0 0.0
          %519 = vmatpush1.msra.mxu0 %v482
          %520 = vmatprep.subr.mxu0 0.0
          %521 = vmatpush1.msra.mxu0 %v483
          %522 = vmatprep.subr.mxu0 0.0
          %523 = vmatpush1.msra.mxu0 %v484
          %524 = vmatprep.subr.mxu0 0.0
          %525 = vmatpush1.msra.mxu0 0.0
          %526 = vmatprep.subr.mxu0 0.0
          %527 = vmatpush1.msra.mxu0 0.0
          %528 = vmatprep.subr.mxu0 0.0
          %529 = vmatpush1.msra.mxu0 0.0
          %530 = vmatprep.subr.mxu0 0.0
          %531 = vmatpush1.msra.mxu0 0.0
          %532 = vmatprep.subr.mxu0 0.0
          %533 = vmatpush1.msra.mxu0 0.0
          %534 = vmatprep.subr.mxu0 0.0
          %535 = vmatpush1.msra.mxu0 0.0
          %536 = vmatprep.subr.mxu0 0.0
          %537 = vmatpush1.msra.mxu0 0.0
          %538 = vmatprep.subr.mxu0 0.0
          %539 = vmatpush1.msra.mxu0 0.0
          %540 = vmatprep.subr.mxu0 0.0
          %541 = vmatpush1.msra.mxu0 0.0
          %542 = vmatprep.subr.mxu0 0.0
          %543 = vmatpush1.msra.mxu0 0.0
          %544 = vmatprep.subr.mxu0 0.0
          %545 = vmatpush1.msra.mxu0 0.0
          %546 = vmatprep.subr.mxu0 0.0
          %547 = vmatpush1.msra.mxu0 0.0
          %548 = vmatprep.subr.mxu0 0.0
          %549 = vmatpush1.msra.mxu0 0.0
          %550 = vmatprep.subr.mxu0 0.0
          %551 = vmatpush1.msra.mxu0 0.0
          %552 = vmatprep.subr.mxu0 0.0
          %553 = vmatpush1.msra.mxu0 0.0
          %554 = vmatprep.subr.mxu0 0.0
          %555 = vmatpush1.msra.mxu0 0.0
          %556 = vmatprep.mubr.f32.mxu0 0.0
          %557 = vmatmul.mubr.f32.gmra.mrb[0].mxu0 %v357
          %v558 = vpop.f32.mrb[0].mxu0
          %v559 = vadd.f32 %v490, %v558
          %v560 = vpop.f32.mrb[0].mxu0
          %561 = vdwg.mxu0
          %v562 = vxor.u32 %v559, 2147483648
          %v563 = vmul.f32 %v562, 1.442695
          %v564 = vpow.pop %v563
          %v565 = vadd.f32 %v564, 1.0
          %v566 = vrcp.pop %v565
          %v567 = vmul.f32 1.0, %v566
          %v568 = vld [vmem:[%s8] sm:$0x1]
          %v570 = vlaneseq
          %v571 = vshrl.u32 %v570, 7
          %v572 = vsub.s32 0, %v571
          %v573 = vrot.slane %v568, %v572
          %v575 = vmul.f32 %v567, %v573
          %v576 = vmul.f32 %v575, 1.442695
          %v577 = vpow.pop %v576
          %v578 = vmul.f32 %v577, %v577
          %v579 = vld [vmem:[%s350] sm:$0xff]
          %vm580 = vcmp.eq.s32.totalorder %v579, 0
          %v581 = vsub.f32 1.0, %v578
          %v582 = vrsqrt.pop %v581
          %v583 = vmul.f32 %v581, %v582
          %vm584 = vcmp.eq.f32.partialorder %v581, inf
          %v585 = vsel %vm584, %v581, %v583
          %vm586 = vcmp.eq.f32.partialorder %v581, 0.0
          %v587 = vand.u32 %v581, 2147483648
          %v588 = vsel %vm586, %v587, %v585
          %v589 = vsel %vm580, 1, 0
          %590 = vset.pattern.permute.xlu0 0
          %591 = vperm.xlu0 %590, %v589
          %v592 = vpop.permute.xlu0 %591
          %vm593 = vcmp.eq.s32.totalorder %v592, 1
          %v594 = vsel %vm593, 1.0, %v588
          %v595 = vmul.f32 %v457, %v594
          %v596 = vsel %vm593, 0.0, %v577
          %v597 = vld [vmem:[#allocation6] sm:$0x3]
          %v598 = vmul.f32 %v596, %v597
          %v599 = vadd.f32 %v598, %v595
          %v601 = vrot.slane %v599, 6
          %v603 = vmul.f32 %v596, %v601
          %v604 = vadd.f32 %v603, %v595
          %v606 = vrot.slane %v604, 6
          %v608 = vmul.f32 %v596, %v606
          %v609 = vadd.f32 %v608, %v595
          %v611 = vrot.slane %v609, 6
          %v613 = vmul.f32 %v596, %v611
          %v614 = vadd.f32 %v613, %v595
          %vm615 = vcmask 1041408
          %v616 = vsel %vm615, %v599, %v604
          %vm617 = vcmask 1043456
          %v618 = vsel %vm617, %v616, %v609
          %vm619 = vcmask 1045504
          %v620 = vsel %vm619, %v618, %v614
          %621 = vst [vmem:[%s340] sm:$0xff] %v620
          %622 = vst [vmem:[#allocation6 - $0x6] sm:$0xc0] %v614
        $region64: #{rglru_forward.1} parent=51 // pred_fallthru
          _
        %s623 = sand.u32 %s218, 1
        %s624 = scalar_lea.sflag [#allocation5], %s623
        %s625 = sand.u32 %s218, 1
        %s626 = smul.addr %s625, 8
        %s627 = scalar_lea.vmem [#allocation4], %s626
        // Predicated region
        $region65: #{rglru_forward.1} parent=51 // pred_check
          %p628 = pneg %p228
        $region66: #{rglru_forward.1} parent=51 // pred_check_branch
          %630 = sbr.rel (%p628) target = $region68
        $region67: #{rglru_forward.1} parent=51 // pred_region
          %s632 = ssub.s32 128, 128
          %633 = vsyncadd %s624, %s632
          %s634 = smul.addr %s32, 128
          %s635 = scalar_lea.hbm %s9, %s634
          %s637 = sshll.u32 %s627, 4
          %s638 = int_to_ptr.vmem [resolvable:$true] %s637
          %640 = dma.vmem_to_hbm [thread:$0]  %s638, 128, %s635, %s624
        $region68: #{rglru_forward.1} parent=51 // pred_fallthru
          _
        // Predicated region
        $region69: #{rglru_forward.1} parent=51 // pred_check
          %p641 = pneg %p249
        $region70: #{rglru_forward.1} parent=51 // pred_check_branch
          %643 = sbr.rel (%p641) target = $region72
        $region71: #{rglru_forward.1} parent=51 // pred_region
          %s645 = ssub.s32 32, 32
          %646 = vsyncadd [#allocation7], %s645
          %s648 = sshll.u32 [#allocation6], 4
          %s649 = int_to_ptr.vmem [resolvable:$true] %s648
          %651 = dma.vmem_to_hbm [thread:$0]  %s649, 32, %s10, [#allocation7]
        $region72: #{rglru_forward.1} parent=51 // pred_fallthru
          _
        // Predicated region
        $region73: #{rglru_forward.1} parent=51 // pred_check
          %p652 = pneg %p249
        $region74: #{rglru_forward.1} parent=51 // pred_check_branch
          %654 = sbr.rel (%p652) target = $region76
        $region75: #{rglru_forward.1} parent=51 // pred_region
          %655 = dma.done [#allocation7], 32
        $region76: #{rglru_forward.1} parent=51 // pred_fallthru
          _
      $region52: #{rglru_forward.1} parent=5 // pred_fallthru
        _
      %p656 = scmp.le.s32.totalorder 2, %s27
      // Predicated region
      $region77: #{rglru_forward.1} parent=5 // pred_check
        %p657 = pneg %p656
      $region78: #{rglru_forward.1} parent=5 // pred_check_branch
        %659 = sbr.rel (%p657) target = $region80
      $region79: #{rglru_forward.1} parent=5 // pred_region
        %s660 = ssub.s32 %s27, 2
        // Predicated region
        $region81: #{rglru_forward.1} parent=79 // pred_check
          %p661 = pneg %p234
        $region82: #{rglru_forward.1} parent=79 // pred_check_branch
          %663 = sbr.rel (%p661) target = $region84
        $region83: #{rglru_forward.1} parent=79 // pred_region
          %s664 = sand.u32 %s219, 1
          %s665 = scalar_lea.sflag [#allocation5], %s664
          %s666 = sand.u32 %s219, 1
          %s667 = smul.addr %s666, 8
          %s668 = scalar_lea.vmem [#allocation4], %s667
          %669 = dma.done %s665, 128
        $region84: #{rglru_forward.1} parent=79 // pred_fallthru
          _
      $region80: #{rglru_forward.1} parent=5 // pred_fallthru
        _
    $region6: #{rglru_forward.1} parent=1 // loop_footer
      %s31 = sadd.s32 1, %s27
    $region7: #{rglru_forward.1} parent=1 // loop_footer_branch
      %26 = sbr.rel target = $region3
    $region8: #{rglru_forward.1} parent=1 // loop_exit
      _
    %670 = vsyncpa [#allocation5], 1
    %s671 = scalar_lea.sflag [#allocation5], 1
    %672 = vsyncpa %s671, 1
    %673 = vsyncpa [#allocation7], 1

</llo_original>
